<compile_context>
chip_gen: v6e
topology: v6e:2x2x1
jax: 0.10.0
libtpu: 0.0.40
codegen_flags: <defaults>
</compile_context>

<pallas_src>
import functools

import numpy as np
import jax
import jax.numpy as jnp
from jax.experimental import pallas as pl
from jax.experimental.pallas import tpu as pltpu


def make_positional_encoding(d_model: int, max_len: int,
                             dtype=jnp.float32) -> jnp.ndarray:
    """Buffer construction identical to the PyTorch __init__ (even d_model).

    Cast to the compute dtype ONCE here so the forward never re-casts per call.
    """
    position = np.arange(max_len, dtype=np.float32)[:, None]                 # (max_len, 1)
    div_term = np.exp(np.arange(0, d_model, 2, dtype=np.float32)
                      * (-np.log(10000.0) / d_model))                        # (ceil(d/2),)
    pe = np.zeros((max_len, d_model), dtype=np.float32)
    pe[:, 0::2] = np.sin(position * div_term)
    pe[:, 1::2] = np.cos(position * div_term[: d_model // 2])
    return jnp.asarray(pe, dtype=dtype)                                      # (max_len, D)


def _pe_add_kernel(x_ref, pe_ref, o_ref, *, batch: int, d_model: int):
    # x_ref / o_ref : (tile_s, B*D)   pe_ref : (tile_s, D)
    pe = pe_ref[...]                                   # small pe tile, loaded once
    if batch == 1:
        o_ref[...] = x_ref[...] + pe
    elif d_model % 128 == 0:
        # Lane-aligned case: each batch slab is a whole-vreg lane window -->
        # pure VPU adds and unmasked, lane-aligned stores. No relayout needed.
        for b in range(batch):
            lo = b * d_model
            o_ref[:, lo:lo + d_model] = x_ref[:, lo:lo + d_model] + pe
    else:
        # Unaligned D (e.g. 32): build the batch broadcast ONCE per tile and do a
        # single whole-block add.  This trades one tile-build (XLU) for the B lane
        # rotates + B masked vst.msk partial stores the sliced path would emit.
        pe_full = jnp.tile(pe, (1, batch))             # (tile_s, B*D)
        o_ref[...] = x_ref[...] + pe_full


def positional_encoding_forward(x: jnp.ndarray, pe: jnp.ndarray) -> jnp.ndarray:
    """x: (S, B, D); pe: (max_len, D), max_len >= S, already in x.dtype.

    Returns x + pe[:S] broadcast over batch (dropout = eval/identity).
    """
    S, B, D = x.shape
    BD = B * D
    itemsize = jnp.dtype(x.dtype).itemsize

    if pe.dtype != x.dtype:
        # One-time init cost only; precompute pe in x.dtype to avoid this per call.
        pe = pe.astype(x.dtype)

    # Plain-JAX glue: flatten x so the trailing (lane) dim is as wide as possible.
    x2 = x.reshape(S, BD)                              # (S, B*D)

    # --- tile sizing -------------------------------------------------------
    # dtype-native sublane pack: 8 rows f32, 16 bf16, 32 int8/fp8.
    sub = {1: 32, 2: 16}.get(itemsize, 8)
    bytes_per_row = max(BD * itemsize, 1)
    # ~4 MiB of x per block (rides the HBM roofline, v7x-safe double-buffered),
    # but force >=2 (even) grid steps so v7x's two TCs both get "parallel" work.
    n_steps = max(2, pl.cdiv(S * bytes_per_row, 4 * 1024 * 1024))
    if n_steps % 2:
        n_steps += 1
    tile_s = pl.cdiv(S, n_steps)
    tile_s = max(sub, pl.cdiv(tile_s, sub) * sub)      # round up to sublane pack
    if tile_s >= S:
        tile_s = S                                     # tiny S: one full-extent block
    grid = (pl.cdiv(S, tile_s),)

    # pe's block sublane dim must be a multiple of the sublane pack or equal pe's
    # full leading dim.  Rare awkward-S fallback (tile_s == S, S % sub != 0):
    # slice pe (cheap contiguous S*D-byte slice, no cast) so tile_s == pe rows.
    if tile_s % sub != 0 and tile_s != pe.shape[0]:
        pe = pe[:S]

    cost = pl.CostEstimate(
        flops=S * BD,
        transcendentals=0,
        bytes_accessed=(2 * S * BD + S * D) * itemsize,
    )

    out2 = pl.pallas_call(
        functools.partial(_pe_add_kernel, batch=B, d_model=D),
        out_shape=jax.ShapeDtypeStruct((S, BD), x.dtype),
        grid_spec=pltpu.PrefetchScalarGridSpec(
            num_scalar_prefetch=0,
            grid=grid,
            in_specs=[
                pl.BlockSpec((tile_s, BD), lambda i: (i, 0)),
                pl.BlockSpec((tile_s, D), lambda i: (i, 0)),   # only first ~S rows of pe
            ],
            out_specs=pl.BlockSpec((tile_s, BD), lambda i: (i, 0)),
        ),
        compiler_params=pltpu.CompilerParams(
            dimension_semantics=("parallel",),         # v7x: shard steps over both TCs
        ),
        cost_estimate=cost,
        # NOTE: if x is dead after this op in the surrounding model, add
        # input_output_aliases={0: 0} to write back into x's HBM buffer.
    )(x2, pe)

    return out2.reshape(S, B, D)


if __name__ == "__main__":
    # Small shapes consistent with the module: seq=8, batch=2, d_model=32, max_len=16
    seq_len, batch, d_model, max_len = 8, 2, 32, 16
    dropout_p = 0.1  # unused in eval-mode forward (identity)

    key = jax.random.PRNGKey(0)
    x = jax.random.normal(key, (seq_len, batch, d_model), dtype=jnp.float32)

    # pe built once, already in x.dtype (no per-call slice/cast pass).
    pe = make_positional_encoding(d_model, max_len, dtype=x.dtype)

    out = positional_encoding_forward(x, pe)
    out = jax.block_until_ready(out)

    # Reference check (plain JAX): exact same add of the same precomputed buffer.
    ref = x + pe[:seq_len][:, None, :]
    np.testing.assert_allclose(np.asarray(out), np.asarray(ref), rtol=1e-6, atol=1e-6)

    print("KERNEL_OK")
</pallas_src>

<mosaic_0001>
module attributes {stable_mosaic.version = 11 : i64} {
  func.func @_pe_add_kernel(%arg0: i32, %arg1: memref<8x64xf32, #tpu.memory_space<vmem>>, %arg2: memref<8x32xf32, #tpu.memory_space<vmem>>, %arg3: memref<8x64xf32, #tpu.memory_space<vmem>>) attributes {dimension_semantics = [#tpu.dimension_semantics<parallel>], iteration_bounds = array<i64: 1>, scalar_prefetch = 0 : i64, scratch_operands = 0 : i64, tpu.core_type = #tpu.core_type<tc>, window_params = [{transform_indices = @transform_0, window_bounds = array<i64: 8, 64>}, {transform_indices = @transform_1, window_bounds = array<i64: 8, 32>}, {transform_indices = @transform_2, window_bounds = array<i64: 8, 64>}]} {
    %c0 = arith.constant 0 : index
    %c0_0 = arith.constant 0 : index
    %0 = vector.load %arg2[%c0, %c0_0] : memref<8x32xf32, #tpu.memory_space<vmem>>, vector<8x32xf32>
    %1 = tpu.concatenate %0, %0 in 1 : vector<8x32xf32>, vector<8x32xf32> -> vector<8x64xf32>
    %c0_1 = arith.constant 0 : index
    %c0_2 = arith.constant 0 : index
    %2 = vector.load %arg1[%c0_1, %c0_2] : memref<8x64xf32, #tpu.memory_space<vmem>>, vector<8x64xf32>
    %3 = arith.addf %2, %1 : vector<8x64xf32>
    %c0_3 = arith.constant 0 : index
    %c0_4 = arith.constant 0 : index
    %4 = vector.load %arg3[%c0_3, %c0_4] : memref<8x64xf32, #tpu.memory_space<vmem>>, vector<8x64xf32>
    tpu.vector_store %arg3[%c0_3, %c0_4], %3 {strides = array<i32>} : memref<8x64xf32, #tpu.memory_space<vmem>>, vector<8x64xf32>,
    return
  }
  func.func @transform_0(%arg0: i32) -> (i32, i32) {
    %c0_i32 = arith.constant 0 : i32
    %c0_i32_0 = arith.constant 0 : i32
    return %arg0, %c0_i32 : i32, i32
  }
  func.func @transform_1(%arg0: i32) -> (i32, i32) {
    %c0_i32 = arith.constant 0 : i32
    %c0_i32_0 = arith.constant 0 : i32
    return %arg0, %c0_i32 : i32, i32
  }
  func.func @transform_2(%arg0: i32) -> (i32, i32) {
    %c0_i32 = arith.constant 0 : i32
    %c0_i32_0 = arith.constant 0 : i32
    return %arg0, %c0_i32 : i32, i32
  }
}

</mosaic_0001>

<llo_original>
// kernel: tpu_custom_call.1
$region0: #{tpu_custom_call.1}
  #allocation0 [shape = 'u32[]', space=smem, size = 0x4, offset = 0x4, fixed_abs, tag = 'smem constant byte address 0x4 - core index']
  #allocation1 [shape = 'u32[144,128]{1,0:T(1,128)}', space=vmem, size = 0x12000, scoped, tag = 'internal scratch']
  %s0 = inlined_call_operand.hbm [shape: f32[8,64], index: 0, kind: input, shape index: {}]
  %s1 = inlined_call_operand.hbm [shape: f32[16,32], index: 1, kind: input, shape index: {}]
  %s2 = inlined_call_operand.hbm [shape: f32[8,64], index: 2, kind: output, shape index: {}]
  %s3 = sld [smem:[#allocation0]]
  $region26: #{tpu_custom_call.1} parent=0
    _
  %s5 = ssub.s32 1, %s3
  %s6 = scalar_select 0, %s5, %s3
  $region1: #{tpu_custom_call.1} parent=0
    #allocation2 [shape = 'u8[4096]{0}', space=vmem, size = 0x1000, scoped, tag = 'input window, operand 0, single buffered']
    #allocation3 [shape = 's32[1]{0}', space=sflag, size = 0x4, scoped, tag = 'scoped memory for tpu_custom_call.1']
    #allocation4 [shape = 's32[1]{0}', space=sflag, size = 0x4, scoped, tag = 'scoped memory for tpu_custom_call.1']
    #allocation5 [shape = 'u8[4096]{0}', space=vmem, size = 0x1000, scoped, tag = 'input window, operand 1, single buffered']
    #allocation6 [shape = 's32[1]{0}', space=sflag, size = 0x4, scoped, tag = 'scoped memory for tpu_custom_call.1']
    #allocation7 [shape = 'u8[4096]{0}', space=vmem, size = 0x1000, scoped, tag = 'output window, operand 0, single buffered']
    %7 = vsyncpa [#allocation3], 0
    %8 = vsyncpa [#allocation6], 0
    %9 = vsyncpa [#allocation4], 0
    // Predicated region
    $region2: #{tpu_custom_call.1} parent=1 // pred_check
      _
    $region3: #{tpu_custom_call.1} parent=1 // pred_check_branch
      %11 = sbr.rel (0) target = $region5
    $region4: #{tpu_custom_call.1} parent=1 // pred_region
      %s13 = ssub.s32 128, 128
      %14 = vsyncadd [#allocation3], %s13
      %s16 = sshll.u32 [#allocation2], 4
      %s17 = int_to_ptr.vmem [resolvable:$true] %s16
      %19 = dma.hbm_to_vmem [thread:$0]  %s0, 128, %s17, [#allocation3]
    $region5: #{tpu_custom_call.1} parent=1 // pred_fallthru
      _
    // Predicated region
    $region6: #{tpu_custom_call.1} parent=1 // pred_check
      _
    $region7: #{tpu_custom_call.1} parent=1 // pred_check_branch
      %21 = sbr.rel (0) target = $region9
    $region8: #{tpu_custom_call.1} parent=1 // pred_region
      %s23 = ssub.s32 128, 128
      %24 = vsyncadd [#allocation6], %s23
      %s26 = sshll.u32 [#allocation5], 4
      %s27 = int_to_ptr.vmem [resolvable:$true] %s26
      %29 = dma.hbm_to_vmem [thread:$0]  %s1, 128, %s27, [#allocation6]
    $region9: #{tpu_custom_call.1} parent=1 // pred_fallthru
      _
    // Predicated region
    $region10: #{tpu_custom_call.1} parent=1 // pred_check
      _
    $region11: #{tpu_custom_call.1} parent=1 // pred_check_branch
      %31 = sbr.rel (0) target = $region13
    $region12: #{tpu_custom_call.1} parent=1 // pred_region
      %32 = dma.done [#allocation3], 128
    $region13: #{tpu_custom_call.1} parent=1 // pred_fallthru
      _
    // Predicated region
    $region14: #{tpu_custom_call.1} parent=1 // pred_check
      _
    $region15: #{tpu_custom_call.1} parent=1 // pred_check_branch
      %34 = sbr.rel (0) target = $region17
    $region16: #{tpu_custom_call.1} parent=1 // pred_region
      %35 = dma.done [#allocation6], 128
    $region17: #{tpu_custom_call.1} parent=1 // pred_fallthru
      _
    %v36 = vld [vmem:[#allocation5] sm:$0xff]
    %38 = vrot.lane.b32.xlu0 %v36, 32
    %v39 = vpop.permute.xlu0 %38
    %vm41 = vcmask 261120
    %v42 = vsel %vm41, %v36, %v39
    %v43 = vld [vmem:[#allocation2] sm:$0xff]
    %v44 = vadd.f32 %v43, %v42
    %vm45 = vcmask 523264
    %46 = vst.msk [vmem:[#allocation7] sm:$0xff] %vm45, %v44
    // Predicated region
    $region18: #{tpu_custom_call.1} parent=1 // pred_check
      _
    $region19: #{tpu_custom_call.1} parent=1 // pred_check_branch
      %48 = sbr.rel (0) target = $region21
    $region20: #{tpu_custom_call.1} parent=1 // pred_region
      %s50 = ssub.s32 128, 128
      %51 = vsyncadd [#allocation4], %s50
      %s53 = sshll.u32 [#allocation7], 4
      %s54 = int_to_ptr.vmem [resolvable:$true] %s53
      %56 = dma.vmem_to_hbm [thread:$0]  %s54, 128, %s2, [#allocation4]
    $region21: #{tpu_custom_call.1} parent=1 // pred_fallthru
      _
    // Predicated region
    $region22: #{tpu_custom_call.1} parent=1 // pred_check
      _
    $region23: #{tpu_custom_call.1} parent=1 // pred_check_branch
      %58 = sbr.rel (0) target = $region25
    $region24: #{tpu_custom_call.1} parent=1 // pred_region
      %59 = dma.done [#allocation4], 128
    $region25: #{tpu_custom_call.1} parent=1 // pred_fallthru
      _
    %60 = vsyncpa [#allocation3], 1
    %61 = vsyncpa [#allocation6], 1
    %62 = vsyncpa [#allocation4], 1

</llo_original>
